<compile_context>
chip_gen: v6e
topology: v6e:2x2x1
jax: 0.10.0
libtpu: 0.0.40
codegen_flags: <defaults>
</compile_context>

<pallas_src>
import jax
import jax.numpy as jnp
from jax.experimental import pallas as pl
from jax.experimental.pallas import tpu as pltpu

_LANES = 128
_SUBLANES = 8
# Explicit scoped-VMEM request: fits v7x's 64 MiB physical VMEM, raises the
# 16/32 MiB scoped defaults on v5e/v6e.
_VMEM_LIMIT_BYTES = 48 << 20
_VMEM_BUDGET_BYTES = int(0.75 * _VMEM_LIMIT_BYTES)


def _mta_kernel(x_ref, w1_ref, b1_ref, w2_ref, b2_ref, out_ref, attn_ref):
    TB, T, D = x_ref.shape
    A = w1_ref.shape[1]

    # --- Linear(D, A) + tanh: one (TB*T, D) @ (D, A) MXU pass, f32 accumulate.
    # x and w1 arrive in the same dtype (wrapper casts w1), so bf16 inputs run
    # the MXU at bf16 rate.
    x2 = x_ref[...].reshape(TB * T, D)
    h = jnp.tanh(
        jnp.dot(x2, w1_ref[...], preferred_element_type=jnp.float32)
        + b1_ref[...].astype(jnp.float32)
    )                                                       # (TB*T, A) f32

    # --- Linear(A, 1): VPU multiply + cross-lane reduce (no N=1 MXU pass).
    # Keep everything lane-dense 2-D: scores are (TB, T).
    w2_row = w2_ref[...].astype(jnp.float32)                # (1, A)
    scores = jnp.sum(h.reshape(TB, T, A) * w2_row, axis=-1) + b2_ref[0]  # (TB, T)

    # --- Softmax over the timeframe axis (last axis of the 2-D layout).
    m = jnp.max(scores, axis=-1, keepdims=True)             # (TB, 1)
    e = jnp.exp(scores - m)                                 # (TB, T)
    denom = jnp.sum(e, axis=-1, keepdims=True)              # (TB, 1)
    w = e * pl.reciprocal(denom, approx=True)               # (TB, T) f32

    # --- Weighted sum over timeframes: unrolled loop over small static T keeps
    # only one (TB, D) f32 slice + one (TB, D) f32 accumulator live (no f32
    # copy of the whole x tile).
    acc = x_ref[:, 0, :].astype(jnp.float32) * w[:, 0:1]
    for t in range(1, T):
        acc = acc + x_ref[:, t, :].astype(jnp.float32) * w[:, t:t + 1]

    out_ref[...] = acc.astype(out_ref.dtype)
    attn_ref[...] = w                                       # lane-dense (TB, T) f32


def _pick_batch_tile(T, D, A, x_itemsize):
    """Largest TB (multiple of 8) whose per-grid-step VMEM footprint fits budget."""
    a_pad = max(A, _LANES)
    t_pad = max(T, _LANES)
    per_tb = (
        2 * T * D * x_itemsize        # x block, double-buffered
        + 2 * D * x_itemsize          # weighted-features out block, double-buffered
        + 2 * t_pad * 4               # attn (TB, T) f32 block (lane-padded), double-buffered
        + T * a_pad * 4               # h temporary (f32, lane-padded when A < 128)
        + 2 * D * 4                   # f32 x slice + f32 accumulator
    )
    fixed = (
        2 * D * a_pad * x_itemsize    # w1 (resident, double-buffered, lane-padded)
        + 4 * _SUBLANES * a_pad * 4   # b1 + w2 rows
    )
    tb = (_VMEM_BUDGET_BYTES - fixed) // per_tb
    tb = int(max(_SUBLANES, min(tb, 512)))
    return (tb // _SUBLANES) * _SUBLANES


def multi_timeframe_attention(x, w1, b1, w2, b2, *, batch_block=None):
    """x: (B, T, D). Returns (weighted_features (B, D), attention_weights (B, T, 1)).

    w1: (D, A), b1: (A,) or (1, A), w2: (A, 1) or (A,), b2: scalar-like.
    batch_block (optional) caps the batch tile size; should be a multiple of 8.
    """
    B, T, D = x.shape
    A = w1.shape[-1]
    x_itemsize = jnp.dtype(x.dtype).itemsize

    tb_cap = _pick_batch_tile(T, D, A, x_itemsize)
    if batch_block is not None:
        tb_cap = min(tb_cap, max(_SUBLANES, (batch_block // _SUBLANES) * _SUBLANES))

    if B <= tb_cap:
        if B >= 2 * _SUBLANES:
            # v7x megacore: make sure the (parallel) grid has >= 2 steps so both
            # TensorCores get work; keep TB a multiple of 8 for the output blocks.
            TB = ((-(-B // 2) + _SUBLANES - 1) // _SUBLANES) * _SUBLANES
        else:
            TB = B
    else:
        TB = tb_cap

    num_tiles = pl.cdiv(B, TB)
    Bp = num_tiles * TB
    x_in = x if Bp == B else jnp.pad(x, ((0, Bp - B), (0, 0), (0, 0)))

    # Match MXU operand dtypes (bf16 x -> bf16 w1); bias / score row stay f32
    # (they are added / multiplied on the f32 vector path).
    w1_c = w1.astype(x.dtype)
    b1_row = jnp.reshape(b1, (1, A)).astype(jnp.float32)
    w2_row = jnp.reshape(w2, (1, A)).astype(jnp.float32)   # column -> row
    b2_s = jnp.reshape(jnp.asarray(b2), (1,)).astype(jnp.float32)

    out_shapes = (
        jax.ShapeDtypeStruct((Bp, D), x.dtype),
        jax.ShapeDtypeStruct((Bp, T), jnp.float32),
    )
    weighted, attn2d = pl.pallas_call(
        _mta_kernel,
        out_shape=out_shapes,
        grid=(num_tiles,),
        in_specs=[
            pl.BlockSpec((TB, T, D), lambda i: (i, 0, 0)),        # x batch tile
            pl.BlockSpec((D, A), lambda i: (0, 0)),               # w1 (resident)
            pl.BlockSpec((1, A), lambda i: (0, 0)),               # b1 row
            pl.BlockSpec((1, A), lambda i: (0, 0)),               # w2 row
            pl.BlockSpec(memory_space=pltpu.MemorySpace.SMEM),    # b2 scalar
        ],
        out_specs=(
            pl.BlockSpec((TB, D), lambda i: (i, 0)),
            pl.BlockSpec((TB, T), lambda i: (i, 0)),
        ),
        compiler_params=pltpu.CompilerParams(
            dimension_semantics=("parallel",),
            vmem_limit_bytes=_VMEM_LIMIT_BYTES,
        ),
    )(x_in, w1_c, b1_row, w2_row, b2_s)

    weighted = weighted[:B]
    attn = attn2d[:B].reshape(B, T, 1)
    return weighted, attn


def _reference(x, w1, b1, w2, b2):
    h = jnp.tanh(x @ w1 + jnp.reshape(b1, (1, 1, -1)))
    scores = h @ jnp.reshape(w2, (-1, 1)) + jnp.reshape(b2, (1, 1, 1))
    w = jax.nn.softmax(scores, axis=1)
    return jnp.sum(x * w, axis=1), w


if __name__ == "__main__":
    # Small shapes consistent with (batch, num_timeframes, feature_dim)
    B, T, D, A = 2, 8, 32, 16

    key = jax.random.PRNGKey(0)
    kx, kw1, kb1, kw2, kb2, kx2 = jax.random.split(key, 6)

    x = jax.random.normal(kx, (B, T, D), dtype=jnp.float32)

    # Deterministic init mimicking torch.nn.Linear (uniform +-1/sqrt(fan_in))
    lim1 = 1.0 / jnp.sqrt(jnp.float32(D))
    lim2 = 1.0 / jnp.sqrt(jnp.float32(A))
    w1 = jax.random.uniform(kw1, (D, A), jnp.float32, -lim1, lim1)
    b1 = jax.random.uniform(kb1, (A,), jnp.float32, -lim1, lim1)
    w2 = jax.random.uniform(kw2, (A, 1), jnp.float32, -lim2, lim2)
    b2 = jax.random.uniform(kb2, (1,), jnp.float32, -lim2, lim2)

    # Tolerance accounts for the EUP approximate reciprocal in the softmax.
    TOL = 5e-3

    weighted, attn = multi_timeframe_attention(x, w1, b1, w2, b2)
    jax.block_until_ready((weighted, attn))
    ref_w, ref_a = _reference(x, w1, b1, w2, b2)
    assert weighted.shape == (B, D) and attn.shape == (B, T, 1)
    assert jnp.allclose(weighted, ref_w, rtol=TOL, atol=TOL)
    assert jnp.allclose(attn, ref_a, rtol=TOL, atol=TOL)

    # Second check: multi-tile grid + batch padding path (B not divisible by TB).
    B2 = 20
    x2 = jax.random.normal(kx2, (B2, T, D), dtype=jnp.float32)
    weighted2, attn2 = multi_timeframe_attention(x2, w1, b1, w2, b2, batch_block=8)
    jax.block_until_ready((weighted2, attn2))
    ref_w2, ref_a2 = _reference(x2, w1, b1, w2, b2)
    assert weighted2.shape == (B2, D) and attn2.shape == (B2, T, 1)
    assert jnp.allclose(weighted2, ref_w2, rtol=TOL, atol=TOL)
    assert jnp.allclose(attn2, ref_a2, rtol=TOL, atol=TOL)

    print("KERNEL_OK")
</pallas_src>

<mosaic_0001>
module attributes {stable_mosaic.version = 11 : i64} {
  func.func @_mta_kernel(%arg0: i32, %arg1: memref<2x8x32xf32, #tpu.memory_space<vmem>>, %arg2: memref<32x16xf32, #tpu.memory_space<vmem>>, %arg3: memref<1x16xf32, #tpu.memory_space<vmem>>, %arg4: memref<1x16xf32, #tpu.memory_space<vmem>>, %arg5: memref<1xf32, #tpu.memory_space<smem>>, %arg6: memref<2x32xf32, #tpu.memory_space<vmem>>, %arg7: memref<2x8xf32, #tpu.memory_space<vmem>>) attributes {dimension_semantics = [#tpu.dimension_semantics<parallel>], iteration_bounds = array<i64: 1>, scalar_prefetch = 0 : i64, scratch_operands = 0 : i64, tpu.core_type = #tpu.core_type<tc>, window_params = [{transform_indices = @transform_0, window_bounds = array<i64: 2, 8, 32>}, {pipeline_mode = #tpu.pipeline_mode<synchronous>, transform_indices = @transform_1, window_bounds = array<i64: 32, 16>}, {pipeline_mode = #tpu.pipeline_mode<synchronous>, transform_indices = @transform_2, window_bounds = array<i64: 1, 16>}, {pipeline_mode = #tpu.pipeline_mode<synchronous>, transform_indices = @transform_3, window_bounds = array<i64: 1, 16>}, {transform_indices = @transform_4, window_bounds = array<i64: 1>}, {transform_indices = @transform_5, window_bounds = array<i64: 2, 32>}, {transform_indices = @transform_6, window_bounds = array<i64: 2, 8>}]} {
    %c0 = arith.constant 0 : index
    %c0_0 = arith.constant 0 : index
    %c0_1 = arith.constant 0 : index
    %0 = vector.load %arg1[%c0, %c0_0, %c0_1] : memref<2x8x32xf32, #tpu.memory_space<vmem>>, vector<2x8x32xf32>
    %1 = vector.shape_cast %0 : vector<2x8x32xf32> to vector<16x32xf32>
    %c0_2 = arith.constant 0 : index
    %c0_3 = arith.constant 0 : index
    %2 = vector.load %arg2[%c0_2, %c0_3] : memref<32x16xf32, #tpu.memory_space<vmem>>, vector<32x16xf32>
    %cst = arith.constant dense<0.000000e+00> : vector<16x16xf32>
    %3 = tpu.matmul %1, %2, %cst {dimension_numbers = #tpu.dot_dimension_numbers<[1], [0], [0], [1], [0, 0, 1, 1], [], []>} : vector<16x32xf32>, vector<32x16xf32>, vector<16x16xf32> -> vector<16x16xf32>
    %c0_4 = arith.constant 0 : index
    %c0_5 = arith.constant 0 : index
    %4 = vector.load %arg3[%c0_4, %c0_5] : memref<1x16xf32, #tpu.memory_space<vmem>>, vector<1x16xf32>
    %5 = vector.broadcast %4 : vector<1x16xf32> to vector<16x16xf32>
    %6 = arith.addf %3, %5 : vector<16x16xf32>
    %7 = math.tanh %6 : vector<16x16xf32>
    %c0_6 = arith.constant 0 : index
    %c0_7 = arith.constant 0 : index
    %8 = vector.load %arg4[%c0_6, %c0_7] : memref<1x16xf32, #tpu.memory_space<vmem>>, vector<1x16xf32>
    %9 = vector.shape_cast %7 : vector<16x16xf32> to vector<2x8x16xf32>
    %10 = vector.shape_cast %8 : vector<1x16xf32> to vector<1x1x16xf32>
    %11 = vector.broadcast %10 : vector<1x1x16xf32> to vector<2x8x16xf32>
    %12 = arith.mulf %9, %11 : vector<2x8x16xf32>
    %cst_8 = arith.constant dense<0.000000e+00> : vector<2x8xf32>
    %13 = vector.multi_reduction <add>, %12, %cst_8 [2] : vector<2x8x16xf32> to vector<2x8xf32>
    %c0_9 = arith.constant 0 : index
    %14 = memref.load %arg5[%c0_9] : memref<1xf32, #tpu.memory_space<smem>>
    %15 = vector.broadcast %14 : f32 to vector<2x8xf32>
    %16 = arith.addf %13, %15 : vector<2x8xf32>
    %cst_10 = arith.constant dense<0xFF800000> : vector<2xf32>
    %17 = vector.multi_reduction <maximumf>, %16, %cst_10 [1] : vector<2x8xf32> to vector<2xf32>
    %18 = vector.shape_cast %17 : vector<2xf32> to vector<2x1xf32>
    %19 = vector.broadcast %18 : vector<2x1xf32> to vector<2x8xf32>
    %20 = arith.subf %16, %19 : vector<2x8xf32>
    %21 = math.exp %20 : vector<2x8xf32>
    %cst_11 = arith.constant dense<0.000000e+00> : vector<2xf32>
    %22 = vector.multi_reduction <add>, %21, %cst_11 [1] : vector<2x8xf32> to vector<2xf32>
    %23 = vector.shape_cast %22 : vector<2xf32> to vector<2x1xf32>
    %24 = tpu.reciprocal %23 {approx = true} : vector<2x1xf32> -> vector<2x1xf32>
    %25 = vector.broadcast %24 : vector<2x1xf32> to vector<2x8xf32>
    %26 = arith.mulf %21, %25 : vector<2x8xf32>
    %c0_12 = arith.constant 0 : index
    %c0_13 = arith.constant 0 : index
    %c0_14 = arith.constant 0 : index
    %27 = vector.load %arg1[%c0_12, %c0_13, %c0_14] : memref<2x8x32xf32, #tpu.memory_space<vmem>>, vector<2x1x32xf32>
    %28 = vector.shape_cast %27 : vector<2x1x32xf32> to vector<2x32xf32>
    %29 = vector.extract_strided_slice %26 {offsets = [0, 0], sizes = [2, 1], strides = [1, 1]} : vector<2x8xf32> to vector<2x1xf32>
    %30 = vector.broadcast %29 : vector<2x1xf32> to vector<2x32xf32>
    %31 = arith.mulf %28, %30 : vector<2x32xf32>
    %c0_15 = arith.constant 0 : index
    %c1 = arith.constant 1 : index
    %c0_16 = arith.constant 0 : index
    %32 = vector.load %arg1[%c0_15, %c1, %c0_16] : memref<2x8x32xf32, #tpu.memory_space<vmem>>, vector<2x1x32xf32>
    %33 = vector.shape_cast %32 : vector<2x1x32xf32> to vector<2x32xf32>
    %34 = vector.extract_strided_slice %26 {offsets = [0, 1], sizes = [2, 1], strides = [1, 1]} : vector<2x8xf32> to vector<2x1xf32>
    %35 = vector.broadcast %34 : vector<2x1xf32> to vector<2x32xf32>
    %36 = arith.mulf %33, %35 : vector<2x32xf32>
    %37 = arith.addf %31, %36 : vector<2x32xf32>
    %c0_17 = arith.constant 0 : index
    %c2 = arith.constant 2 : index
    %c0_18 = arith.constant 0 : index
    %38 = vector.load %arg1[%c0_17, %c2, %c0_18] : memref<2x8x32xf32, #tpu.memory_space<vmem>>, vector<2x1x32xf32>
    %39 = vector.shape_cast %38 : vector<2x1x32xf32> to vector<2x32xf32>
    %40 = vector.extract_strided_slice %26 {offsets = [0, 2], sizes = [2, 1], strides = [1, 1]} : vector<2x8xf32> to vector<2x1xf32>
    %41 = vector.broadcast %40 : vector<2x1xf32> to vector<2x32xf32>
    %42 = arith.mulf %39, %41 : vector<2x32xf32>
    %43 = arith.addf %37, %42 : vector<2x32xf32>
    %c0_19 = arith.constant 0 : index
    %c3 = arith.constant 3 : index
    %c0_20 = arith.constant 0 : index
    %44 = vector.load %arg1[%c0_19, %c3, %c0_20] : memref<2x8x32xf32, #tpu.memory_space<vmem>>, vector<2x1x32xf32>
    %45 = vector.shape_cast %44 : vector<2x1x32xf32> to vector<2x32xf32>
    %46 = vector.extract_strided_slice %26 {offsets = [0, 3], sizes = [2, 1], strides = [1, 1]} : vector<2x8xf32> to vector<2x1xf32>
    %47 = vector.broadcast %46 : vector<2x1xf32> to vector<2x32xf32>
    %48 = arith.mulf %45, %47 : vector<2x32xf32>
    %49 = arith.addf %43, %48 : vector<2x32xf32>
    %c0_21 = arith.constant 0 : index
    %c4 = arith.constant 4 : index
    %c0_22 = arith.constant 0 : index
    %50 = vector.load %arg1[%c0_21, %c4, %c0_22] : memref<2x8x32xf32, #tpu.memory_space<vmem>>, vector<2x1x32xf32>
    %51 = vector.shape_cast %50 : vector<2x1x32xf32> to vector<2x32xf32>
    %52 = vector.extract_strided_slice %26 {offsets = [0, 4], sizes = [2, 1], strides = [1, 1]} : vector<2x8xf32> to vector<2x1xf32>
    %53 = vector.broadcast %52 : vector<2x1xf32> to vector<2x32xf32>
    %54 = arith.mulf %51, %53 : vector<2x32xf32>
    %55 = arith.addf %49, %54 : vector<2x32xf32>
    %c0_23 = arith.constant 0 : index
    %c5 = arith.constant 5 : index
    %c0_24 = arith.constant 0 : index
    %56 = vector.load %arg1[%c0_23, %c5, %c0_24] : memref<2x8x32xf32, #tpu.memory_space<vmem>>, vector<2x1x32xf32>
    %57 = vector.shape_cast %56 : vector<2x1x32xf32> to vector<2x32xf32>
    %58 = vector.extract_strided_slice %26 {offsets = [0, 5], sizes = [2, 1], strides = [1, 1]} : vector<2x8xf32> to vector<2x1xf32>
    %59 = vector.broadcast %58 : vector<2x1xf32> to vector<2x32xf32>
    %60 = arith.mulf %57, %59 : vector<2x32xf32>
    %61 = arith.addf %55, %60 : vector<2x32xf32>
    %c0_25 = arith.constant 0 : index
    %c6 = arith.constant 6 : index
    %c0_26 = arith.constant 0 : index
    %62 = vector.load %arg1[%c0_25, %c6, %c0_26] : memref<2x8x32xf32, #tpu.memory_space<vmem>>, vector<2x1x32xf32>
    %63 = vector.shape_cast %62 : vector<2x1x32xf32> to vector<2x32xf32>
    %64 = vector.extract_strided_slice %26 {offsets = [0, 6], sizes = [2, 1], strides = [1, 1]} : vector<2x8xf32> to vector<2x1xf32>
    %65 = vector.broadcast %64 : vector<2x1xf32> to vector<2x32xf32>
    %66 = arith.mulf %63, %65 : vector<2x32xf32>
    %67 = arith.addf %61, %66 : vector<2x32xf32>
    %c0_27 = arith.constant 0 : index
    %c7 = arith.constant 7 : index
    %c0_28 = arith.constant 0 : index
    %68 = vector.load %arg1[%c0_27, %c7, %c0_28] : memref<2x8x32xf32, #tpu.memory_space<vmem>>, vector<2x1x32xf32>
    %69 = vector.shape_cast %68 : vector<2x1x32xf32> to vector<2x32xf32>
    %70 = vector.extract_strided_slice %26 {offsets = [0, 7], sizes = [2, 1], strides = [1, 1]} : vector<2x8xf32> to vector<2x1xf32>
    %71 = vector.broadcast %70 : vector<2x1xf32> to vector<2x32xf32>
    %72 = arith.mulf %69, %71 : vector<2x32xf32>
    %73 = arith.addf %67, %72 : vector<2x32xf32>
    %c0_29 = arith.constant 0 : index
    %c0_30 = arith.constant 0 : index
    %74 = vector.load %arg6[%c0_29, %c0_30] : memref<2x32xf32, #tpu.memory_space<vmem>>, vector<2x32xf32>
    tpu.vector_store %arg6[%c0_29, %c0_30], %73 {strides = array<i32>} : memref<2x32xf32, #tpu.memory_space<vmem>>, vector<2x32xf32>,
    %c0_31 = arith.constant 0 : index
    %c0_32 = arith.constant 0 : index
    %75 = vector.load %arg7[%c0_31, %c0_32] : memref<2x8xf32, #tpu.memory_space<vmem>>, vector<2x8xf32>
    tpu.vector_store %arg7[%c0_31, %c0_32], %26 {strides = array<i32>} : memref<2x8xf32, #tpu.memory_space<vmem>>, vector<2x8xf32>,
    return
  }
  func.func @transform_0(%arg0: i32) -> (i32, i32, i32) {
    %c0_i32 = arith.constant 0 : i32
    %c0_i32_0 = arith.constant 0 : i32
    %c0_i32_1 = arith.constant 0 : i32
    return %arg0, %c0_i32, %c0_i32_0 : i32, i32, i32
  }
  func.func @transform_1(%arg0: i32) -> (i32, i32) {
    %c0_i32 = arith.constant 0 : i32
    %c0_i32_0 = arith.constant 0 : i32
    %c0_i32_1 = arith.constant 0 : i32
    return %c0_i32, %c0_i32_0 : i32, i32
  }
  func.func @transform_2(%arg0: i32) -> (i32, i32) {
    %c0_i32 = arith.constant 0 : i32
    %c0_i32_0 = arith.constant 0 : i32
    %c0_i32_1 = arith.constant 0 : i32
    return %c0_i32, %c0_i32_0 : i32, i32
  }
  func.func @transform_3(%arg0: i32) -> (i32, i32) {
    %c0_i32 = arith.constant 0 : i32
    %c0_i32_0 = arith.constant 0 : i32
    %c0_i32_1 = arith.constant 0 : i32
    return %c0_i32, %c0_i32_0 : i32, i32
  }
  func.func @transform_4(%arg0: i32) -> i32 {
    %c0_i32 = arith.constant 0 : i32
    %c0_i32_0 = arith.constant 0 : i32
    return %c0_i32 : i32
  }
  func.func @transform_5(%arg0: i32) -> (i32, i32) {
    %c0_i32 = arith.constant 0 : i32
    %c0_i32_0 = arith.constant 0 : i32
    return %arg0, %c0_i32 : i32, i32
  }
  func.func @transform_6(%arg0: i32) -> (i32, i32) {
    %c0_i32 = arith.constant 0 : i32
    %c0_i32_0 = arith.constant 0 : i32
    return %arg0, %c0_i32 : i32, i32
  }
}

</mosaic_0001>

<llo_original>
// kernel: tpu_custom_call.1
$region0: #{tpu_custom_call.1}
  #allocation0 [shape = 'u32[]', space=smem, size = 0x4, offset = 0x4, fixed_abs, tag = 'smem constant byte address 0x4 - core index']
  #allocation1 [shape = 'u32[144,128]{1,0:T(1,128)}', space=vmem, size = 0x12000, scoped, tag = 'internal scratch']
  #allocation2 [shape = 'f32[1]{0:T(128)S(6)}', space=smem, size = 0x200, scoped, tag = 'scoped memory for tpu_custom_call.1']
  %s0 = inlined_call_operand.vmem [shape: f32[2,8,32], index: 0, kind: input, shape index: {}]
  %s1 = inlined_call_operand.vmem [shape: f32[32,16], index: 1, kind: input, shape index: {}]
  %s2 = inlined_call_operand.vmem [shape: f32[1,16], index: 2, kind: input, shape index: {}]
  %s3 = inlined_call_operand.vmem [shape: f32[1,16], index: 3, kind: input, shape index: {}]
  %s4 = inlined_call_operand.<no memory space> [shape: f32[1], index: 4, kind: input, shape index: {}]
  %s5 = inlined_call_operand.hbm [shape: f32[2,32], index: 5, kind: output, shape index: {0}]
  %s6 = inlined_call_operand.hbm [shape: f32[2,8], index: 6, kind: output, shape index: {1}]
  %7 = xla_tuple %s5, %s6
  %s8 = sld [smem:[#allocation0]]
  $region38: #{tpu_custom_call.1} parent=0
    _
  %s10 = ssub.s32 1, %s8
  %s11 = scalar_select 0, %s10, %s8
  %12 = sst [smem:[#allocation2]] %s4
  $region1: #{tpu_custom_call.1} parent=0
    #allocation3 [shape = 'u8[1024]{0}', space=vmem, size = 0x400, scoped, tag = 'output window, operand 0, single buffered']
    #allocation4 [shape = 's32[1]{0}', space=sflag, size = 0x4, scoped, tag = 'scoped memory for tpu_custom_call.1']
    #allocation5 [shape = 'u8[1024]{0}', space=vmem, size = 0x400, scoped, tag = 'output window, operand 1, single buffered']
    #allocation6 [shape = 's32[1]{0}', space=sflag, size = 0x4, scoped, tag = 'scoped memory for tpu_custom_call.1']
    %13 = vsyncpa [#allocation4], 0
    %14 = vsyncpa [#allocation6], 0
    // Predicated region
    $region2: #{tpu_custom_call.1} parent=1 // pred_check
      _
    $region3: #{tpu_custom_call.1} parent=1 // pred_check_branch
      %16 = sbr.rel (0) target = $region5
    $region4: #{tpu_custom_call.1} parent=1 // pred_region
      _
    $region5: #{tpu_custom_call.1} parent=1 // pred_fallthru
      _
    // Predicated region
    $region6: #{tpu_custom_call.1} parent=1 // pred_check
      _
    $region7: #{tpu_custom_call.1} parent=1 // pred_check_branch
      %18 = sbr.rel (0) target = $region9
    $region8: #{tpu_custom_call.1} parent=1 // pred_region
      _
    $region9: #{tpu_custom_call.1} parent=1 // pred_fallthru
      _
    // Predicated region
    $region10: #{tpu_custom_call.1} parent=1 // pred_check
      _
    $region11: #{tpu_custom_call.1} parent=1 // pred_check_branch
      %20 = sbr.rel (0) target = $region13
    $region12: #{tpu_custom_call.1} parent=1 // pred_region
      _
    $region13: #{tpu_custom_call.1} parent=1 // pred_fallthru
      _
    // Predicated region
    $region14: #{tpu_custom_call.1} parent=1 // pred_check
      _
    $region15: #{tpu_custom_call.1} parent=1 // pred_check_branch
      %22 = sbr.rel (0) target = $region17
    $region16: #{tpu_custom_call.1} parent=1 // pred_region
      _
    $region17: #{tpu_custom_call.1} parent=1 // pred_fallthru
      _
    // Predicated region
    $region18: #{tpu_custom_call.1} parent=1 // pred_check
      _
    $region19: #{tpu_custom_call.1} parent=1 // pred_check_branch
      %24 = sbr.rel (0) target = $region21
    $region20: #{tpu_custom_call.1} parent=1 // pred_region
      _
    $region21: #{tpu_custom_call.1} parent=1 // pred_fallthru
      _
    %v25 = vld [vmem:[%s0] sm:$0xff]
    %v26 = vld [vmem:[%s0 + $0x8] sm:$0xff]
    %v27 = vld [vmem:[%s1] sm:$0xff]
    %v28 = vld [vmem:[%s1 + $0x8] sm:$0xff]
    %v29 = vld [vmem:[%s1 + $0x10] sm:$0xff]
    %v30 = vld [vmem:[%s1 + $0x18] sm:$0xff]
    %v31 = vld [vmem:[%s2] sm:$0x1]
    %v33 = vlaneseq
    %v34 = vshrl.u32 %v33, 7
    %v35 = vsub.s32 0, %v34
    %v36 = vrot.slane %v31, %v35
    %vm38 = vcmask 261120
    %v40 = vsel %vm38, %v25, 0
    %v43 = vsel %vm38, %v26, 0
    %45 = vmatprep.subr.mxu0 0.0
    %46 = vmatpush1.msra.mxu0 0.0
    %47 = vmatprep.subr.mxu0 0.0
    %48 = vmatpush1.msra.mxu0 0.0
    %49 = vmatprep.subr.mxu0 0.0
    %50 = vmatpush1.msra.mxu0 0.0
    %51 = vmatprep.subr.mxu0 0.0
    %52 = vmatpush1.msra.mxu0 0.0
    %53 = vmatprep.subr.mxu0 0.0
    %54 = vmatpush1.msra.mxu0 0.0
    %55 = vmatprep.subr.mxu0 0.0
    %56 = vmatpush1.msra.mxu0 0.0
    %57 = vmatprep.subr.mxu0 0.0
    %58 = vmatpush1.msra.mxu0 0.0
    %59 = vmatprep.subr.mxu0 0.0
    %60 = vmatpush1.msra.mxu0 0.0
    %61 = vmatprep.subr.mxu0 0.0
    %62 = vmatpush1.msra.mxu0 0.0
    %63 = vmatprep.subr.mxu0 0.0
    %64 = vmatpush1.msra.mxu0 0.0
    %65 = vmatprep.subr.mxu0 0.0
    %66 = vmatpush1.msra.mxu0 0.0
    %67 = vmatprep.subr.mxu0 0.0
    %68 = vmatpush1.msra.mxu0 0.0
    %69 = vmatprep.subr.mxu0 0.0
    %70 = vmatpush1.msra.mxu0 %v30
    %71 = vmatprep.subr.mxu0 0.0
    %72 = vmatpush1.msra.mxu0 %v29
    %73 = vmatprep.subr.mxu0 0.0
    %74 = vmatpush1.msra.mxu0 %v28
    %75 = vmatprep.subr.mxu0 0.0
    %76 = vmatpush1.msra.mxu0 %v27
    %77 = vmatprep.subr.mxu0 0.0
    %78 = vmatpush2.msra.mxu0 0.0
    %79 = vmatprep.subr.mxu0 0.0
    %80 = vmatpush2.msra.mxu0 0.0
    %81 = vmatprep.subr.mxu0 0.0
    %82 = vmatpush2.msra.mxu0 0.0
    %83 = vmatprep.subr.mxu0 0.0
    %84 = vmatpush2.msra.mxu0 0.0
    %85 = vmatprep.subr.mxu0 0.0
    %86 = vmatpush2.msra.mxu0 0.0
    %87 = vmatprep.subr.mxu0 0.0
    %88 = vmatpush2.msra.mxu0 0.0
    %89 = vmatprep.subr.mxu0 0.0
    %90 = vmatpush2.msra.mxu0 0.0
    %91 = vmatprep.subr.mxu0 0.0
    %92 = vmatpush2.msra.mxu0 0.0
    %93 = vmatprep.subr.mxu0 0.0
    %94 = vmatpush2.msra.mxu0 0.0
    %95 = vmatprep.subr.mxu0 0.0
    %96 = vmatpush2.msra.mxu0 0.0
    %97 = vmatprep.subr.mxu0 0.0
    %98 = vmatpush2.msra.mxu0 0.0
    %99 = vmatprep.subr.mxu0 0.0
    %100 = vmatpush2.msra.mxu0 0.0
    %101 = vmatprep.subr.mxu0 0.0
    %102 = vmatpush2.msra.mxu0 0.0
    %103 = vmatprep.subr.mxu0 0.0
    %104 = vmatpush2.msra.mxu0 0.0
    %105 = vmatprep.subr.mxu0 0.0
    %106 = vmatpush2.msra.mxu0 0.0
    %107 = vmatprep.subr.mxu0 0.0
    %108 = vmatpush2.msra.mxu0 0.0
    %109 = vmatprep.mubr.f32.mxu0 0.0
    %110 = vmatmul.mubr.f32.gmra.mxu0 %v40
    %v111 = vpop.f32.mrf.mxu0
    %v112 = vadd.f32 %v36, %v111
    %v113 = vpop.f32.mrf.mxu0
    %114 = vmatprep.mubr.f32.mxu0 0.0
    %115 = vmatmul.mubr.f32.gmra.mxu0 %v43
    %v116 = vpop.f32.mrf.mxu0
    %v117 = vadd.f32 %v36, %v116
    %v118 = vpop.f32.mrf.mxu0
    %119 = vdwg.mxu0
    %v120 = vtanh.pop %v112
    %v121 = vtanh.pop %v117
    %v122 = vld [vmem:[%s3] sm:$0x1]
    %v124 = vlaneseq
    %v125 = vshrl.u32 %v124, 7
    %v126 = vsub.s32 0, %v125
    %v127 = vrot.slane %v122, %v126
    %v129 = vmul.f32 %v120, %v127
    %v130 = vmul.f32 %v121, %v127
    %vm131 = vcmask 130048
    %v132 = vsel %vm131, %v129, 0.0
    %133 = vadd.xlane.f32.xlu0 %v132
    %v134 = vpop.xlane.xlu0 %133
    %v135 = vsel %vm131, %v130, 0.0
    %136 = vadd.xlane.f32.xlu0 %v135
    %v137 = vpop.xlane.xlu0 %136
    %s138 = sld [smem:[#allocation2]]
    %v139 = vstv %s138
    %v140 = vadd.f32 %v134, %v139
    %v141 = vadd.f32 %v137, %v139
    %v144 = vlaneseq
    %v145 = vand.u32 %v144, 127
    %v146 = vlaneseq
    %v147 = vshrl.u32 %v146, 7
    %v148 = vsub.s32 %v145, %v147
    %v149 = vrot.slane %v140, %v148
    %v150 = vlaneseq
    %v151 = vshrl.u32 %v150, 7
    %v152 = vsub.s32 %v145, %v151
    %v153 = vrot.slane %v141, %v152
    %vm154 = vcmask 1041409
    %v155 = vsel %vm154, %v153, %v149
    %vm157 = vcmask 58368
    %v158 = vsel %vm157, %v155, -inf
    %159 = vmax.xlane.f32.xlu0 %v158
    %v160 = vpop.xlane.xlu0 %159
    %v162 = vlaneseq
    %v163 = vshrl.u32 %v162, 7
    %v164 = vsub.s32 0, %v163
    %v165 = vrot.slane %v160, %v164
    %v166 = vlaneseq
    %v167 = vshrl.u32 %v166, 7
    %v168 = vsub.s32 1, %v167
    %v169 = vrot.slane %v160, %v168
    %v172 = vsub.f32 %v140, %v165
    %v173 = vsub.f32 %v141, %v169
    %v174 = vmul.f32 %v172, 1.442695
    %v175 = vpow.pop %v174
    %v176 = vmul.f32 %v173, 1.442695
    %v177 = vpow.pop %v176
    %180 = vset.pattern.permute.xlu0 0
    %181 = vperm.xlu0 %180, %v175
    %v182 = vpop.permute.xlu0 %181
    %183 = vset.pattern.permute.xlu0 0
    %184 = vperm.xlu0 %183, %v177
    %v185 = vpop.permute.xlu0 %184
    %v186 = vlaneseq
    %v187 = vshrl.u32 %v186, 7
    %v188 = vsub.s32 %v145, %v187
    %v189 = vrot.slane %v182, %v188
    %v190 = vlaneseq
    %v191 = vshrl.u32 %v190, 7
    %v192 = vsub.s32 %v145, %v191
    %v193 = vrot.slane %v185, %v192
    %v194 = vsel %vm154, %v193, %v189
    %v196 = vsel %vm157, %v194, 0.0
    %197 = vadd.xlane.f32.xlu0 %v196
    %v198 = vpop.xlane.xlu0 %197
    %v199 = vrcp.pop %v198
    %v201 = vlaneseq
    %v202 = vshrl.u32 %v201, 7
    %v203 = vsub.s32 0, %v202
    %v204 = vrot.slane %v199, %v203
    %v205 = vlaneseq
    %v206 = vshrl.u32 %v205, 7
    %v207 = vsub.s32 1, %v206
    %v208 = vrot.slane %v199, %v207
    %v211 = vmul.f32 %v175, %v204
    %v212 = vmul.f32 %v177, %v208
    %v213 = vld [vmem:[%s0] sm:$0x1]
    %v214 = vld [vmem:[%s0 + $0x8] sm:$0x1]
    %v215 = vlaneseq
    %v216 = vshrl.u32 %v215, 7
    %v217 = vsub.s32 0, %v216
    %v218 = vrot.slane %v211, %v217
    %v219 = vlaneseq
    %v220 = vshrl.u32 %v219, 7
    %v221 = vsub.s32 0, %v220
    %v222 = vrot.slane %v212, %v221
    %225 = vset.pattern.permute.xlu0 0
    %226 = vperm.xlu0 %225, %v218
    %v227 = vpop.permute.xlu0 %226
    %228 = vset.pattern.permute.xlu0 0
    %229 = vperm.xlu0 %228, %v222
    %v230 = vpop.permute.xlu0 %229
    %v233 = vmul.f32 %v213, %v227
    %v234 = vmul.f32 %v214, %v230
    %v235 = vld [vmem:[%s0 + $0x1] sm:$0x1]
    %v236 = vld [vmem:[%s0 + $0x9] sm:$0x1]
    %v237 = vlaneseq
    %v238 = vshrl.u32 %v237, 7
    %v239 = vsub.s32 1, %v238
    %v240 = vrot.slane %v211, %v239
    %v241 = vlaneseq
    %v242 = vshrl.u32 %v241, 7
    %v243 = vsub.s32 1, %v242
    %v244 = vrot.slane %v212, %v243
    %247 = vset.pattern.permute.xlu0 0
    %248 = vperm.xlu0 %247, %v240
    %v249 = vpop.permute.xlu0 %248
    %250 = vset.pattern.permute.xlu0 0
    %251 = vperm.xlu0 %250, %v244
    %v252 = vpop.permute.xlu0 %251
    %v255 = vmul.f32 %v235, %v249
    %v256 = vmul.f32 %v236, %v252
    %v257 = vadd.f32 %v233, %v255
    %v258 = vadd.f32 %v234, %v256
    %v259 = vld [vmem:[%s0 + $0x2] sm:$0x1]
    %v260 = vld [vmem:[%s0 + $0xa] sm:$0x1]
    %v261 = vlaneseq
    %v262 = vshrl.u32 %v261, 7
    %v263 = vsub.s32 2, %v262
    %v264 = vrot.slane %v211, %v263
    %v265 = vlaneseq
    %v266 = vshrl.u32 %v265, 7
    %v267 = vsub.s32 2, %v266
    %v268 = vrot.slane %v212, %v267
    %271 = vset.pattern.permute.xlu0 0
    %272 = vperm.xlu0 %271, %v264
    %v273 = vpop.permute.xlu0 %272
    %274 = vset.pattern.permute.xlu0 0
    %275 = vperm.xlu0 %274, %v268
    %v276 = vpop.permute.xlu0 %275
    %v279 = vmul.f32 %v259, %v273
    %v280 = vmul.f32 %v260, %v276
    %v281 = vadd.f32 %v257, %v279
    %v282 = vadd.f32 %v258, %v280
    %v283 = vld [vmem:[%s0 + $0x3] sm:$0x1]
    %v284 = vld [vmem:[%s0 + $0xb] sm:$0x1]
    %v285 = vlaneseq
    %v286 = vshrl.u32 %v285, 7
    %v287 = vsub.s32 3, %v286
    %v288 = vrot.slane %v211, %v287
    %v289 = vlaneseq
    %v290 = vshrl.u32 %v289, 7
    %v291 = vsub.s32 3, %v290
    %v292 = vrot.slane %v212, %v291
    %295 = vset.pattern.permute.xlu0 0
    %296 = vperm.xlu0 %295, %v288
    %v297 = vpop.permute.xlu0 %296
    %298 = vset.pattern.permute.xlu0 0
    %299 = vperm.xlu0 %298, %v292
    %v300 = vpop.permute.xlu0 %299
    %v303 = vmul.f32 %v283, %v297
    %v304 = vmul.f32 %v284, %v300
    %v305 = vadd.f32 %v281, %v303
    %v306 = vadd.f32 %v282, %v304
    %v307 = vld [vmem:[%s0 + $0x4] sm:$0x1]
    %v308 = vld [vmem:[%s0 + $0xc] sm:$0x1]
    %v309 = vlaneseq
    %v310 = vshrl.u32 %v309, 7
    %v311 = vsub.s32 4, %v310
    %v312 = vrot.slane %v211, %v311
    %v313 = vlaneseq
    %v314 = vshrl.u32 %v313, 7
    %v315 = vsub.s32 4, %v314
    %v316 = vrot.slane %v212, %v315
    %319 = vset.pattern.permute.xlu0 0
    %320 = vperm.xlu0 %319, %v312
    %v321 = vpop.permute.xlu0 %320
    %322 = vset.pattern.permute.xlu0 0
    %323 = vperm.xlu0 %322, %v316
    %v324 = vpop.permute.xlu0 %323
    %v327 = vmul.f32 %v307, %v321
    %v328 = vmul.f32 %v308, %v324
    %v329 = vadd.f32 %v305, %v327
    %v330 = vadd.f32 %v306, %v328
    %v331 = vld [vmem:[%s0 + $0x5] sm:$0x1]
    %v332 = vld [vmem:[%s0 + $0xd] sm:$0x1]
    %v333 = vlaneseq
    %v334 = vshrl.u32 %v333, 7
    %v335 = vsub.s32 5, %v334
    %v336 = vrot.slane %v211, %v335
    %v337 = vlaneseq
    %v338 = vshrl.u32 %v337, 7
    %v339 = vsub.s32 5, %v338
    %v340 = vrot.slane %v212, %v339
    %343 = vset.pattern.permute.xlu0 0
    %344 = vperm.xlu0 %343, %v336
    %v345 = vpop.permute.xlu0 %344
    %346 = vset.pattern.permute.xlu0 0
    %347 = vperm.xlu0 %346, %v340
    %v348 = vpop.permute.xlu0 %347
    %v351 = vmul.f32 %v331, %v345
    %v352 = vmul.f32 %v332, %v348
    %v353 = vadd.f32 %v329, %v351
    %v354 = vadd.f32 %v330, %v352
    %v355 = vld [vmem:[%s0 + $0x6] sm:$0x1]
    %v356 = vld [vmem:[%s0 + $0xe] sm:$0x1]
    %v357 = vlaneseq
    %v358 = vshrl.u32 %v357, 7
    %v359 = vsub.s32 6, %v358
    %v360 = vrot.slane %v211, %v359
    %v361 = vlaneseq
    %v362 = vshrl.u32 %v361, 7
    %v363 = vsub.s32 6, %v362
    %v364 = vrot.slane %v212, %v363
    %367 = vset.pattern.permute.xlu0 0
    %368 = vperm.xlu0 %367, %v360
    %v369 = vpop.permute.xlu0 %368
    %370 = vset.pattern.permute.xlu0 0
    %371 = vperm.xlu0 %370, %v364
    %v372 = vpop.permute.xlu0 %371
    %v375 = vmul.f32 %v355, %v369
    %v376 = vmul.f32 %v356, %v372
    %v377 = vadd.f32 %v353, %v375
    %v378 = vadd.f32 %v354, %v376
    %v379 = vld [vmem:[%s0 + $0x7] sm:$0x1]
    %v380 = vld [vmem:[%s0 + $0xf] sm:$0x1]
    %v381 = vlaneseq
    %v382 = vshrl.u32 %v381, 7
    %v383 = vsub.s32 7, %v382
    %v384 = vrot.slane %v211, %v383
    %v385 = vlaneseq
    %v386 = vshrl.u32 %v385, 7
    %v387 = vsub.s32 7, %v386
    %v388 = vrot.slane %v212, %v387
    %391 = vset.pattern.permute.xlu0 0
    %392 = vperm.xlu0 %391, %v384
    %v393 = vpop.permute.xlu0 %392
    %394 = vset.pattern.permute.xlu0 0
    %395 = vperm.xlu0 %394, %v388
    %v396 = vpop.permute.xlu0 %395
    %v399 = vmul.f32 %v379, %v393
    %v400 = vmul.f32 %v380, %v396
    %v401 = vadd.f32 %v377, %v399
    %v402 = vadd.f32 %v378, %v400
    %v405 = vrot.slane %v402, 7
    %v406 = vsel %vm154, %v405, %v401
    %vm408 = vcmask 254976
    %409 = vst.msk [vmem:[#allocation3] sm:$0x3] %vm408, %v406
    %412 = vset.pattern.permute.xlu0 0
    %413 = vperm.xlu0 %412, %v211
    %v414 = vpop.permute.xlu0 %413
    %415 = vset.pattern.permute.xlu0 0
    %416 = vperm.xlu0 %415, %v212
    %v417 = vpop.permute.xlu0 %416
    %v418 = vlaneseq
    %v419 = vshrl.u32 %v418, 7
    %v420 = vsub.s32 %v145, %v419
    %v421 = vrot.slane %v414, %v420
    %v422 = vlaneseq
    %v423 = vshrl.u32 %v422, 7
    %v424 = vsub.s32 %v145, %v423
    %v425 = vrot.slane %v417, %v424
    %v426 = vsel %vm154, %v425, %v421
    %428 = vst.msk [vmem:[#allocation5] sm:$0x3] %vm157, %v426
    // Predicated region
    $region22: #{tpu_custom_call.1} parent=1 // pred_check
      _
    $region23: #{tpu_custom_call.1} parent=1 // pred_check_branch
      %430 = sbr.rel (0) target = $region25
    $region24: #{tpu_custom_call.1} parent=1 // pred_region
      %s432 = ssub.s32 32, 32
      %433 = vsyncadd [#allocation4], %s432
      %s435 = sshll.u32 [#allocation3], 4
      %s436 = int_to_ptr.vmem [resolvable:$true] %s435
      %438 = dma.vmem_to_hbm [thread:$0]  %s436, 32, %s5, [#allocation4]
    $region25: #{tpu_custom_call.1} parent=1 // pred_fallthru
      _
    // Predicated region
    $region26: #{tpu_custom_call.1} parent=1 // pred_check
      _
    $region27: #{tpu_custom_call.1} parent=1 // pred_check_branch
      %440 = sbr.rel (0) target = $region29
    $region28: #{tpu_custom_call.1} parent=1 // pred_region
      %s442 = ssub.s32 32, 32
      %443 = vsyncadd [#allocation6], %s442
      %s445 = sshll.u32 [#allocation5], 4
      %s446 = int_to_ptr.vmem [resolvable:$true] %s445
      %448 = dma.vmem_to_hbm [thread:$0]  %s446, 32, %s6, [#allocation6]
    $region29: #{tpu_custom_call.1} parent=1 // pred_fallthru
      _
    // Predicated region
    $region30: #{tpu_custom_call.1} parent=1 // pred_check
      _
    $region31: #{tpu_custom_call.1} parent=1 // pred_check_branch
      %450 = sbr.rel (0) target = $region33
    $region32: #{tpu_custom_call.1} parent=1 // pred_region
      %451 = dma.done [#allocation4], 32
    $region33: #{tpu_custom_call.1} parent=1 // pred_fallthru
      _
    // Predicated region
    $region34: #{tpu_custom_call.1} parent=1 // pred_check
      _
    $region35: #{tpu_custom_call.1} parent=1 // pred_check_branch
      %453 = sbr.rel (0) target = $region37
    $region36: #{tpu_custom_call.1} parent=1 // pred_region
      %454 = dma.done [#allocation6], 32
    $region37: #{tpu_custom_call.1} parent=1 // pred_fallthru
      _
    %455 = vsyncpa [#allocation4], 1
    %456 = vsyncpa [#allocation6], 1

</llo_original>
